<compile_context>
chip_gen: v7x
topology: tpu7x:2x2x1
jax: 0.10.0
libtpu: 0.0.40
codegen_flags: <defaults>
</compile_context>

<pallas_src>
import functools
import math

import jax
import jax.numpy as jnp
from jax.experimental import pallas as pl
from jax.experimental.pallas import tpu as pltpu


def _round_up(x: int, m: int) -> int:
    return (x + m - 1) // m * m


def _fused_mlp_kernel(x_ref, *refs, num_layers: int):
    # refs = (w1, b1, w2, b2, ..., wN, bN, o_ref)
    # x_ref: (TB, D0); w_i: (D_{i-1}, D_i) bf16; b_i: (1, D_i) f32.
    o_ref = refs[-1]
    h = x_ref[...]
    for i in range(num_layers):                          # static unroll
        w_ref = refs[2 * i]
        b_ref = refs[2 * i + 1]
        acc = jnp.dot(h.astype(w_ref.dtype), w_ref[...],
                      preferred_element_type=jnp.float32)   # MXU, f32 accum
        acc = acc + b_ref[...].astype(jnp.float32)           # fused bias
        if i < num_layers - 1:
            acc = jnp.maximum(acc, 0.0)                       # fused ReLU (f32)
        h = acc
    o_ref[...] = h.astype(o_ref.dtype)                        # single cast + store


def _choose_batch_tiling(batch: int, batch_tile: int, min_grid_steps: int):
    """Pick (TB, padded_B) minimizing padded-row waste.

    If a single grid step suffices, the block spans the full batch (no sublane
    alignment / padding needed).  Otherwise use the smallest 8-aligned tile
    that covers the target number of steps, so e.g. B=130 -> TB=72 / B_p=144
    (2 steps, 14 wasted rows) instead of TB=128 / B_p=256 (~2x waste).
    Pass min_grid_steps=2 on v7x so both TensorCores get work.
    """
    steps = max(min_grid_steps, pl.cdiv(batch, batch_tile))
    if steps <= 1:
        return batch, batch
    tb = _round_up(pl.cdiv(batch, steps), 8)
    return tb, _round_up(batch, tb)


def mlp_forward(x, params, *, batch_tile: int = 256, min_grid_steps: int = 1,
                out_dtype=None):
    """Fused MLP forward.

    params: list of (w, b) with w shape (in, out) (any float dtype, bf16
    recommended) and b shape (out,) or (1, out) in f32.  Params are used as-is
    (no per-call padding / casting); `init_mlp_params` produces them kernel-ready.
    """
    B, Din = x.shape
    num_layers = len(params)
    out_dtype = x.dtype if out_dtype is None else out_dtype

    dims = [Din] + [int(w.shape[1]) for (w, _) in params]

    TB, B_p = _choose_batch_tiling(B, batch_tile, min_grid_steps)
    # Zero rows only; padded rows are sliced off after the call, so correctness
    # is unaffected even with non-zero biases.
    x_in = x if B_p == B else jnp.pad(x, ((0, B_p - B), (0, 0)))

    w_list, b_list = [], []
    for (w, b) in params:
        w_list.append(w)
        b_list.append(b if b.ndim == 2 else b.reshape(1, -1))

    param_bytes = sum(int(a.size) * a.dtype.itemsize for a in w_list + b_list)
    # Single-buffer the constant-index (VMEM-resident) params only when the
    # resident set is big enough to pressure VMEM (matters on v7x's 64 MiB).
    single_buffer_params = param_bytes > (8 << 20)
    param_buf_count = 1 if single_buffer_params else 2

    def _const_spec(shape):
        if single_buffer_params:
            return pl.BlockSpec(shape, lambda i: (0, 0),
                                pipeline_mode=pl.Buffered(1))
        return pl.BlockSpec(shape, lambda i: (0, 0))

    inputs = [x_in]
    in_specs = [pl.BlockSpec((TB, Din), lambda i: (i, 0))]
    for w, b in zip(w_list, b_list):
        inputs += [w, b]
        in_specs += [_const_spec(tuple(int(d) for d in w.shape)),
                     _const_spec(tuple(int(d) for d in b.shape))]

    x_itemsize = jnp.dtype(x.dtype).itemsize
    out_itemsize = jnp.dtype(out_dtype).itemsize

    # Explicit VMEM budget: resident params (x buffer count), double-buffered
    # x / out tiles, plus f32 intermediate-activation headroom.
    vmem_needed = (param_bytes * param_buf_count
                   + 2 * TB * dims[0] * x_itemsize
                   + 2 * TB * dims[-1] * out_itemsize
                   + 4 * TB * max(dims) * 4)
    vmem_limit = int(min(max(vmem_needed + (2 << 20), 32 << 20), 100 << 20))

    flops = 2 * B_p * sum(dims[i] * dims[i + 1] for i in range(num_layers))
    bytes_accessed = (B_p * dims[0] * x_itemsize + param_bytes
                      + B_p * dims[-1] * out_itemsize)

    out_p = pl.pallas_call(
        functools.partial(_fused_mlp_kernel, num_layers=num_layers),
        out_shape=jax.ShapeDtypeStruct((B_p, dims[-1]), out_dtype),
        grid=(B_p // TB,),
        in_specs=in_specs,
        out_specs=pl.BlockSpec((TB, dims[-1]), lambda i: (i, 0)),
        compiler_params=pltpu.CompilerParams(
            dimension_semantics=("parallel",),
            vmem_limit_bytes=vmem_limit),
        cost_estimate=pl.CostEstimate(
            flops=flops, transcendentals=0, bytes_accessed=bytes_accessed),
    )(*inputs)

    return out_p if B_p == B else out_p[:B]


def init_mlp_params(sizes, key, weight_dtype=jnp.bfloat16):
    """Xavier-uniform weights (as in the PyTorch `Xavier` fn), zero biases.

    Returns kernel-ready params: list of (w_transposed, b) with w_transposed
    (in, out) in weight_dtype and bias (1, out) in f32 -- no per-call prep.
    """
    params = []
    for i in range(len(sizes) - 1):
        fan_in, fan_out = sizes[i], sizes[i + 1]
        std = math.sqrt(2.0 / (fan_in + fan_out))
        a = math.sqrt(3.0) * std
        key, sub = jax.random.split(key)
        # PyTorch weight is (out, in); sample in that shape then transpose.
        w = jax.random.uniform(sub, (fan_out, fan_in), dtype=jnp.float32,
                               minval=-a, maxval=a)
        b = jnp.zeros((1, fan_out), dtype=jnp.float32)
        params.append((w.T.astype(weight_dtype), b))
    return params


def mlp_reference(x, params):
    """Pure-JAX reference with identical numerics (bf16 operands, f32 accum)."""
    n = len(params)
    h = x
    for i, (w_t, b) in enumerate(params):
        acc = jnp.dot(h.astype(w_t.dtype), w_t,
                      preferred_element_type=jnp.float32)
        acc = acc + b.astype(jnp.float32)
        if i < n - 1:
            acc = jnp.maximum(acc, 0.0)
        h = acc
    return h.astype(x.dtype)


if __name__ == "__main__":
    sizes = [32, 64, 48, 16]   # MLP(sizes): 3 Linear layers, ReLU between hidden
    batch = 2

    key = jax.random.PRNGKey(0)
    key, xkey = jax.random.split(key)
    x = jax.random.normal(xkey, (batch, sizes[0]), dtype=jnp.float32)

    params = init_mlp_params(sizes, key)

    out = jax.block_until_ready(mlp_forward(x, params))
    ref = mlp_reference(x, params)

    assert out.shape == (batch, sizes[-1])
    assert jnp.allclose(out, ref, atol=5e-3, rtol=5e-3), "mismatch vs reference"

    print("KERNEL_OK")
</pallas_src>

<mosaic_0001>
module attributes {stable_mosaic.version = 11 : i64} {
  func.func @_fused_mlp_kernel(%arg0: i32, %arg1: memref<2x32xf32, #tpu.memory_space<vmem>>, %arg2: memref<32x64xbf16, #tpu.memory_space<vmem>>, %arg3: memref<1x64xf32, #tpu.memory_space<vmem>>, %arg4: memref<64x48xbf16, #tpu.memory_space<vmem>>, %arg5: memref<1x48xf32, #tpu.memory_space<vmem>>, %arg6: memref<48x16xbf16, #tpu.memory_space<vmem>>, %arg7: memref<1x16xf32, #tpu.memory_space<vmem>>, %arg8: memref<2x16xf32, #tpu.memory_space<vmem>>) attributes {dimension_semantics = [#tpu.dimension_semantics<parallel>], iteration_bounds = array<i64: 1>, scalar_prefetch = 0 : i64, scratch_operands = 0 : i64, tpu.core_type = #tpu.core_type<tc>, window_params = [{transform_indices = @transform_0, window_bounds = array<i64: 2, 32>}, {pipeline_mode = #tpu.pipeline_mode<synchronous>, transform_indices = @transform_1, window_bounds = array<i64: 32, 64>}, {pipeline_mode = #tpu.pipeline_mode<synchronous>, transform_indices = @transform_2, window_bounds = array<i64: 1, 64>}, {pipeline_mode = #tpu.pipeline_mode<synchronous>, transform_indices = @transform_3, window_bounds = array<i64: 64, 48>}, {pipeline_mode = #tpu.pipeline_mode<synchronous>, transform_indices = @transform_4, window_bounds = array<i64: 1, 48>}, {pipeline_mode = #tpu.pipeline_mode<synchronous>, transform_indices = @transform_5, window_bounds = array<i64: 48, 16>}, {pipeline_mode = #tpu.pipeline_mode<synchronous>, transform_indices = @transform_6, window_bounds = array<i64: 1, 16>}, {transform_indices = @transform_7, window_bounds = array<i64: 2, 16>}]} {
    %c0 = arith.constant 0 : index
    %c0_0 = arith.constant 0 : index
    %0 = vector.load %arg1[%c0, %c0_0] : memref<2x32xf32, #tpu.memory_space<vmem>>, vector<2x32xf32>
    %1 = arith.truncf %0 : vector<2x32xf32> to vector<2x32xbf16>
    %c0_1 = arith.constant 0 : index
    %c0_2 = arith.constant 0 : index
    %2 = vector.load %arg2[%c0_1, %c0_2] : memref<32x64xbf16, #tpu.memory_space<vmem>>, vector<32x64xbf16>
    %cst = arith.constant dense<0.000000e+00> : vector<2x64xf32>
    %3 = tpu.matmul %1, %2, %cst {dimension_numbers = #tpu.dot_dimension_numbers<[1], [0], [0], [1], [0, 0, 1, 1], [], []>} : vector<2x32xbf16>, vector<32x64xbf16>, vector<2x64xf32> -> vector<2x64xf32>
    %c0_3 = arith.constant 0 : index
    %c0_4 = arith.constant 0 : index
    %4 = vector.load %arg3[%c0_3, %c0_4] : memref<1x64xf32, #tpu.memory_space<vmem>>, vector<1x64xf32>
    %5 = vector.broadcast %4 : vector<1x64xf32> to vector<2x64xf32>
    %6 = arith.addf %3, %5 : vector<2x64xf32>
    %cst_5 = arith.constant 0.000000e+00 : f32
    %7 = vector.broadcast %cst_5 : f32 to vector<2x64xf32>
    %8 = arith.maximumf %6, %7 : vector<2x64xf32>
    %9 = arith.truncf %8 : vector<2x64xf32> to vector<2x64xbf16>
    %c0_6 = arith.constant 0 : index
    %c0_7 = arith.constant 0 : index
    %10 = vector.load %arg4[%c0_6, %c0_7] : memref<64x48xbf16, #tpu.memory_space<vmem>>, vector<64x48xbf16>
    %cst_8 = arith.constant dense<0.000000e+00> : vector<2x48xf32>
    %11 = tpu.matmul %9, %10, %cst_8 {dimension_numbers = #tpu.dot_dimension_numbers<[1], [0], [0], [1], [0, 0, 1, 1], [], []>} : vector<2x64xbf16>, vector<64x48xbf16>, vector<2x48xf32> -> vector<2x48xf32>
    %c0_9 = arith.constant 0 : index
    %c0_10 = arith.constant 0 : index
    %12 = vector.load %arg5[%c0_9, %c0_10] : memref<1x48xf32, #tpu.memory_space<vmem>>, vector<1x48xf32>
    %13 = vector.broadcast %12 : vector<1x48xf32> to vector<2x48xf32>
    %14 = arith.addf %11, %13 : vector<2x48xf32>
    %cst_11 = arith.constant 0.000000e+00 : f32
    %15 = vector.broadcast %cst_11 : f32 to vector<2x48xf32>
    %16 = arith.maximumf %14, %15 : vector<2x48xf32>
    %17 = arith.truncf %16 : vector<2x48xf32> to vector<2x48xbf16>
    %c0_12 = arith.constant 0 : index
    %c0_13 = arith.constant 0 : index
    %18 = vector.load %arg6[%c0_12, %c0_13] : memref<48x16xbf16, #tpu.memory_space<vmem>>, vector<48x16xbf16>
    %cst_14 = arith.constant dense<0.000000e+00> : vector<2x16xf32>
    %19 = tpu.matmul %17, %18, %cst_14 {dimension_numbers = #tpu.dot_dimension_numbers<[1], [0], [0], [1], [0, 0, 1, 1], [], []>} : vector<2x48xbf16>, vector<48x16xbf16>, vector<2x16xf32> -> vector<2x16xf32>
    %c0_15 = arith.constant 0 : index
    %c0_16 = arith.constant 0 : index
    %20 = vector.load %arg7[%c0_15, %c0_16] : memref<1x16xf32, #tpu.memory_space<vmem>>, vector<1x16xf32>
    %21 = vector.broadcast %20 : vector<1x16xf32> to vector<2x16xf32>
    %22 = arith.addf %19, %21 : vector<2x16xf32>
    %c0_17 = arith.constant 0 : index
    %c0_18 = arith.constant 0 : index
    %23 = vector.load %arg8[%c0_17, %c0_18] : memref<2x16xf32, #tpu.memory_space<vmem>>, vector<2x16xf32>
    tpu.vector_store %arg8[%c0_17, %c0_18], %22 {strides = array<i32>} : memref<2x16xf32, #tpu.memory_space<vmem>>, vector<2x16xf32>,
    return
  }
  func.func @transform_0(%arg0: i32) -> (i32, i32) {
    %c0_i32 = arith.constant 0 : i32
    %c0_i32_0 = arith.constant 0 : i32
    return %arg0, %c0_i32 : i32, i32
  }
  func.func @transform_1(%arg0: i32) -> (i32, i32) {
    %c0_i32 = arith.constant 0 : i32
    %c0_i32_0 = arith.constant 0 : i32
    %c0_i32_1 = arith.constant 0 : i32
    return %c0_i32, %c0_i32_0 : i32, i32
  }
  func.func @transform_2(%arg0: i32) -> (i32, i32) {
    %c0_i32 = arith.constant 0 : i32
    %c0_i32_0 = arith.constant 0 : i32
    %c0_i32_1 = arith.constant 0 : i32
    return %c0_i32, %c0_i32_0 : i32, i32
  }
  func.func @transform_3(%arg0: i32) -> (i32, i32) {
    %c0_i32 = arith.constant 0 : i32
    %c0_i32_0 = arith.constant 0 : i32
    %c0_i32_1 = arith.constant 0 : i32
    return %c0_i32, %c0_i32_0 : i32, i32
  }
  func.func @transform_4(%arg0: i32) -> (i32, i32) {
    %c0_i32 = arith.constant 0 : i32
    %c0_i32_0 = arith.constant 0 : i32
    %c0_i32_1 = arith.constant 0 : i32
    return %c0_i32, %c0_i32_0 : i32, i32
  }
  func.func @transform_5(%arg0: i32) -> (i32, i32) {
    %c0_i32 = arith.constant 0 : i32
    %c0_i32_0 = arith.constant 0 : i32
    %c0_i32_1 = arith.constant 0 : i32
    return %c0_i32, %c0_i32_0 : i32, i32
  }
  func.func @transform_6(%arg0: i32) -> (i32, i32) {
    %c0_i32 = arith.constant 0 : i32
    %c0_i32_0 = arith.constant 0 : i32
    %c0_i32_1 = arith.constant 0 : i32
    return %c0_i32, %c0_i32_0 : i32, i32
  }
  func.func @transform_7(%arg0: i32) -> (i32, i32) {
    %c0_i32 = arith.constant 0 : i32
    %c0_i32_0 = arith.constant 0 : i32
    return %arg0, %c0_i32 : i32, i32
  }
}

</mosaic_0001>

<llo_original>
// kernel: tpu_custom_call.1
$region0: #{tpu_custom_call.1}
  #allocation0 [shape = 'u32[]', space=smem, size = 0x4, offset = 0x4, fixed_abs, tag = 'smem constant byte address 0x4 - core index']
  #allocation1 [shape = 'u32[144,128]{1,0:T(1,128)}', space=vmem, size = 0x12000, scoped, tag = 'internal scratch']
  %s0 = inlined_call_operand.vmem [shape: f32[2,32], index: 0, kind: input, shape index: {}]
  %s1 = inlined_call_operand.vmem [shape: bf16[32,64], index: 1, kind: input, shape index: {}]
  %s2 = inlined_call_operand.vmem [shape: f32[1,64], index: 2, kind: input, shape index: {}]
  %s3 = inlined_call_operand.vmem [shape: bf16[64,48], index: 3, kind: input, shape index: {}]
  %s4 = inlined_call_operand.vmem [shape: f32[1,48], index: 4, kind: input, shape index: {}]
  %s5 = inlined_call_operand.vmem [shape: bf16[48,16], index: 5, kind: input, shape index: {}]
  %s6 = inlined_call_operand.vmem [shape: f32[1,16], index: 6, kind: input, shape index: {}]
  %s7 = inlined_call_operand.hbm [shape: f32[2,16], index: 7, kind: output, shape index: {}]
  %s8 = sld [smem:[#allocation0]]
  $region38: #{tpu_custom_call.1} parent=0
    _
  %s10 = ssub.s32 1, %s8
  %s11 = scalar_select 0, %s10, %s8
  $region1: #{tpu_custom_call.1} parent=0
    #allocation2 [shape = 'u8[1024]{0}', space=vmem, size = 0x400, scoped, tag = 'output window, operand 0, single buffered']
    #allocation3 [shape = 's32[1]{0}', space=sflag, size = 0x4, scoped, tag = 'scoped memory for tpu_custom_call.1']
    %12 = vsyncpa [#allocation3], 0
    // Predicated region
    $region2: #{tpu_custom_call.1} parent=1 // pred_check
      _
    $region3: #{tpu_custom_call.1} parent=1 // pred_check_branch
      %14 = sbr.rel (0) target = $region5
    $region4: #{tpu_custom_call.1} parent=1 // pred_region
      _
    $region5: #{tpu_custom_call.1} parent=1 // pred_fallthru
      _
    // Predicated region
    $region6: #{tpu_custom_call.1} parent=1 // pred_check
      _
    $region7: #{tpu_custom_call.1} parent=1 // pred_check_branch
      %16 = sbr.rel (0) target = $region9
    $region8: #{tpu_custom_call.1} parent=1 // pred_region
      _
    $region9: #{tpu_custom_call.1} parent=1 // pred_fallthru
      _
    // Predicated region
    $region10: #{tpu_custom_call.1} parent=1 // pred_check
      _
    $region11: #{tpu_custom_call.1} parent=1 // pred_check_branch
      %18 = sbr.rel (0) target = $region13
    $region12: #{tpu_custom_call.1} parent=1 // pred_region
      _
    $region13: #{tpu_custom_call.1} parent=1 // pred_fallthru
      _
    // Predicated region
    $region14: #{tpu_custom_call.1} parent=1 // pred_check
      _
    $region15: #{tpu_custom_call.1} parent=1 // pred_check_branch
      %20 = sbr.rel (0) target = $region17
    $region16: #{tpu_custom_call.1} parent=1 // pred_region
      _
    $region17: #{tpu_custom_call.1} parent=1 // pred_fallthru
      _
    // Predicated region
    $region18: #{tpu_custom_call.1} parent=1 // pred_check
      _
    $region19: #{tpu_custom_call.1} parent=1 // pred_check_branch
      %22 = sbr.rel (0) target = $region21
    $region20: #{tpu_custom_call.1} parent=1 // pred_region
      _
    $region21: #{tpu_custom_call.1} parent=1 // pred_fallthru
      _
    // Predicated region
    $region22: #{tpu_custom_call.1} parent=1 // pred_check
      _
    $region23: #{tpu_custom_call.1} parent=1 // pred_check_branch
      %24 = sbr.rel (0) target = $region25
    $region24: #{tpu_custom_call.1} parent=1 // pred_region
      _
    $region25: #{tpu_custom_call.1} parent=1 // pred_fallthru
      _
    // Predicated region
    $region26: #{tpu_custom_call.1} parent=1 // pred_check
      _
    $region27: #{tpu_custom_call.1} parent=1 // pred_check_branch
      %26 = sbr.rel (0) target = $region29
    $region28: #{tpu_custom_call.1} parent=1 // pred_region
      _
    $region29: #{tpu_custom_call.1} parent=1 // pred_fallthru
      _
    %v28 = vld [vmem:[%s0] sm:$0x3]
    %v29 = vpack.c.bf16 %v28, %v28
    %v30 = vld [vmem:[%s1] sm:$0xf]
    %v31 = vld [vmem:[%s1 + $0x4] sm:$0xf]
    %v32 = vld [vmem:[%s1 + $0x8] sm:$0xf]
    %v33 = vld [vmem:[%s1 + $0xc] sm:$0xf]
    %v34 = vld [vmem:[%s2] sm:$0x1]
    %v36 = vlaneseq
    %v37 = vshrl.u32 %v36, 7
    %v38 = vsub.s32 0, %v37
    %v39 = vrot.slane %v34, %v38
    %v45 = vunpack.c.l.b16 %v30
    %v46 = vunpack.c.l.b16 %v31
    %v47 = vunpack.c.l.b16 %v32
    %v48 = vunpack.c.l.b16 %v33
    %v49 = vpack.c.b16 %v46, %v45
    %v50 = vpack.c.b16 %v48, %v47
    %vm53 = vcmask 261120
    %v55 = vsel %vm53, %v29, 0
    %57 = vmatprep.subr.bf16.mxu0 0
    %58 = vmatpush1.bf16.msra.mxu0 %v49
    %59 = vmatprep.subr.bf16.mxu0 0
    %60 = vmatpush1.bf16.msra.mxu0 %v50
    %61 = vmatprep.subr.bf16.mxu0 0
    %62 = vmatpush1.bf16.msra.mxu0 0
    %63 = vmatprep.subr.bf16.mxu0 0
    %64 = vmatpush1.bf16.msra.mxu0 0
    %65 = vmatprep.subr.bf16.mxu0 0
    %66 = vmatpush1.bf16.msra.mxu0 0
    %67 = vmatprep.subr.bf16.mxu0 0
    %68 = vmatpush1.bf16.msra.mxu0 0
    %69 = vmatprep.subr.bf16.mxu0 0
    %70 = vmatpush1.bf16.msra.mxu0 0
    %71 = vmatprep.subr.bf16.mxu0 0
    %72 = vmatpush1.bf16.msra.mxu0 0
    %73 = vmatprep.subr.bf16.mxu0 0
    %74 = vmatpush1.bf16.msra.mxu0 0
    %75 = vmatprep.subr.bf16.mxu0 0
    %76 = vmatpush1.bf16.msra.mxu0 0
    %77 = vmatprep.subr.bf16.mxu0 0
    %78 = vmatpush1.bf16.msra.mxu0 0
    %79 = vmatprep.subr.bf16.mxu0 0
    %80 = vmatpush1.bf16.msra.mxu0 0
    %81 = vmatprep.subr.bf16.mxu0 0
    %82 = vmatpush1.bf16.msra.mxu0 0
    %83 = vmatprep.subr.bf16.mxu0 0
    %84 = vmatpush1.bf16.msra.mxu0 0
    %85 = vmatprep.subr.bf16.mxu0 0
    %86 = vmatpush1.bf16.msra.mxu0 0
    %87 = vmatprep.subr.bf16.mxu0 0
    %88 = vmatpush1.bf16.msra.mxu0 0
    %89 = vmatprep.mubr.bf16.mxu0 0
    %90 = vmatmul.mubr.bf16.gmra.mrb[0].mxu0 %v55
    %v91 = vpop.f32.mrb[0].mxu0
    %v92 = vadd.f32 %v39, %v91
    %v93 = vpop.f32.mrb[0].mxu0
    %v94 = vpop.f32.mrb[0].mxu0
    %v95 = vpop.f32.mrb[0].mxu0
    %96 = vdwg.mxu0
    %v97 = vmax.f32 %v92, 0.0
    %v98 = vpack.c.bf16 %v97, %v97
    %v99 = vld [vmem:[%s3] sm:$0xf]
    %v100 = vld [vmem:[%s3 + $0x4] sm:$0xf]
    %v101 = vld [vmem:[%s3 + $0x8] sm:$0xf]
    %v102 = vld [vmem:[%s3 + $0xc] sm:$0xf]
    %v103 = vld [vmem:[%s3 + $0x10] sm:$0xf]
    %v104 = vld [vmem:[%s3 + $0x14] sm:$0xf]
    %v105 = vld [vmem:[%s3 + $0x18] sm:$0xf]
    %v106 = vld [vmem:[%s3 + $0x1c] sm:$0xf]
    %v107 = vld [vmem:[%s4] sm:$0x1]
    %v109 = vlaneseq
    %v110 = vshrl.u32 %v109, 7
    %v111 = vsub.s32 0, %v110
    %v112 = vrot.slane %v107, %v111
    %v122 = vunpack.c.l.b16 %v99
    %v123 = vunpack.c.l.b16 %v100
    %v124 = vunpack.c.l.b16 %v101
    %v125 = vunpack.c.l.b16 %v102
    %v126 = vunpack.c.l.b16 %v103
    %v127 = vunpack.c.l.b16 %v104
    %v128 = vunpack.c.l.b16 %v105
    %v129 = vunpack.c.l.b16 %v106
    %v130 = vpack.c.b16 %v123, %v122
    %v131 = vpack.c.b16 %v125, %v124
    %v132 = vpack.c.b16 %v127, %v126
    %v133 = vpack.c.b16 %v129, %v128
    %vm138 = vcmask 523264
    %v140 = vsel %vm138, %v98, 0
    %142 = vmatprep.subr.bf16.mxu0 0
    %143 = vmatpush1.bf16.msra.mxu0 %v130
    %144 = vmatprep.subr.bf16.mxu0 0
    %145 = vmatpush1.bf16.msra.mxu0 %v131
    %146 = vmatprep.subr.bf16.mxu0 0
    %147 = vmatpush1.bf16.msra.mxu0 %v132
    %148 = vmatprep.subr.bf16.mxu0 0
    %149 = vmatpush1.bf16.msra.mxu0 %v133
    %150 = vmatprep.subr.bf16.mxu0 0
    %151 = vmatpush1.bf16.msra.mxu0 0
    %152 = vmatprep.subr.bf16.mxu0 0
    %153 = vmatpush1.bf16.msra.mxu0 0
    %154 = vmatprep.subr.bf16.mxu0 0
    %155 = vmatpush1.bf16.msra.mxu0 0
    %156 = vmatprep.subr.bf16.mxu0 0
    %157 = vmatpush1.bf16.msra.mxu0 0
    %158 = vmatprep.subr.bf16.mxu0 0
    %159 = vmatpush1.bf16.msra.mxu0 0
    %160 = vmatprep.subr.bf16.mxu0 0
    %161 = vmatpush1.bf16.msra.mxu0 0
    %162 = vmatprep.subr.bf16.mxu0 0
    %163 = vmatpush1.bf16.msra.mxu0 0
    %164 = vmatprep.subr.bf16.mxu0 0
    %165 = vmatpush1.bf16.msra.mxu0 0
    %166 = vmatprep.subr.bf16.mxu0 0
    %167 = vmatpush1.bf16.msra.mxu0 0
    %168 = vmatprep.subr.bf16.mxu0 0
    %169 = vmatpush1.bf16.msra.mxu0 0
    %170 = vmatprep.subr.bf16.mxu0 0
    %171 = vmatpush1.bf16.msra.mxu0 0
    %172 = vmatprep.subr.bf16.mxu0 0
    %173 = vmatpush1.bf16.msra.mxu0 0
    %174 = vmatprep.mubr.bf16.mxu0 0
    %175 = vmatmul.mubr.bf16.gmra.mrb[0].mxu0 %v140
    %v176 = vpop.f32.mrb[0].mxu0
    %v177 = vadd.f32 %v112, %v176
    %v178 = vpop.f32.mrb[0].mxu0
    %v179 = vpop.f32.mrb[0].mxu0
    %v180 = vpop.f32.mrb[0].mxu0
    %181 = vdwg.mxu0
    %v182 = vmax.f32 %v177, 0.0
    %v183 = vpack.c.bf16 %v182, %v182
    %v184 = vld [vmem:[%s5] sm:$0xf]
    %v185 = vld [vmem:[%s5 + $0x4] sm:$0xf]
    %v186 = vld [vmem:[%s5 + $0x8] sm:$0xf]
    %v187 = vld [vmem:[%s5 + $0xc] sm:$0xf]
    %v188 = vld [vmem:[%s5 + $0x10] sm:$0xf]
    %v189 = vld [vmem:[%s5 + $0x14] sm:$0xf]
    %v190 = vld [vmem:[%s6] sm:$0x1]
    %v192 = vlaneseq
    %v193 = vshrl.u32 %v192, 7
    %v194 = vsub.s32 0, %v193
    %v195 = vrot.slane %v190, %v194
    %v203 = vunpack.c.l.b16 %v184
    %v204 = vunpack.c.l.b16 %v185
    %v205 = vunpack.c.l.b16 %v186
    %v206 = vunpack.c.l.b16 %v187
    %v207 = vunpack.c.l.b16 %v188
    %v208 = vunpack.c.l.b16 %v189
    %v209 = vpack.c.b16 %v204, %v203
    %v210 = vpack.c.b16 %v206, %v205
    %v211 = vpack.c.b16 %v208, %v207
    %vm215 = vcmask 392192
    %v217 = vsel %vm215, %v183, 0
    %219 = vmatprep.subr.bf16.mxu0 0
    %220 = vmatpush1.bf16.msra.mxu0 %v209
    %221 = vmatprep.subr.bf16.mxu0 0
    %222 = vmatpush1.bf16.msra.mxu0 %v210
    %223 = vmatprep.subr.bf16.mxu0 0
    %224 = vmatpush1.bf16.msra.mxu0 %v211
    %225 = vmatprep.subr.bf16.mxu0 0
    %226 = vmatpush1.bf16.msra.mxu0 0
    %227 = vmatprep.subr.bf16.mxu0 0
    %228 = vmatpush1.bf16.msra.mxu0 0
    %229 = vmatprep.subr.bf16.mxu0 0
    %230 = vmatpush1.bf16.msra.mxu0 0
    %231 = vmatprep.subr.bf16.mxu0 0
    %232 = vmatpush1.bf16.msra.mxu0 0
    %233 = vmatprep.subr.bf16.mxu0 0
    %234 = vmatpush1.bf16.msra.mxu0 0
    %235 = vmatprep.subr.bf16.mxu0 0
    %236 = vmatpush1.bf16.msra.mxu0 0
    %237 = vmatprep.subr.bf16.mxu0 0
    %238 = vmatpush1.bf16.msra.mxu0 0
    %239 = vmatprep.subr.bf16.mxu0 0
    %240 = vmatpush1.bf16.msra.mxu0 0
    %241 = vmatprep.subr.bf16.mxu0 0
    %242 = vmatpush1.bf16.msra.mxu0 0
    %243 = vmatprep.subr.bf16.mxu0 0
    %244 = vmatpush1.bf16.msra.mxu0 0
    %245 = vmatprep.subr.bf16.mxu0 0
    %246 = vmatpush1.bf16.msra.mxu0 0
    %247 = vmatprep.subr.bf16.mxu0 0
    %248 = vmatpush1.bf16.msra.mxu0 0
    %249 = vmatprep.subr.bf16.mxu0 0
    %250 = vmatpush1.bf16.msra.mxu0 0
    %251 = vmatprep.mubr.bf16.mxu0 0
    %252 = vmatmul.mubr.bf16.gmra.mrb[0].mxu0 %v217
    %v253 = vpop.f32.mrb[0].mxu0
    %v254 = vadd.f32 %v195, %v253
    %v255 = vpop.f32.mrb[0].mxu0
    %v256 = vpop.f32.mrb[0].mxu0
    %v257 = vpop.f32.mrb[0].mxu0
    %258 = vdwg.mxu0
    %vm259 = vcmask 123904
    %260 = vst.msk [vmem:[#allocation2] sm:$0x3] %vm259, %v254
    // Predicated region
    $region30: #{tpu_custom_call.1} parent=1 // pred_check
      _
    $region31: #{tpu_custom_call.1} parent=1 // pred_check_branch
      %262 = sbr.rel (0) target = $region33
    $region32: #{tpu_custom_call.1} parent=1 // pred_region
      %s264 = ssub.s32 32, 32
      %265 = vsyncadd [#allocation3], %s264
      %s267 = sshll.u32 [#allocation2], 4
      %s268 = int_to_ptr.vmem [resolvable:$true] %s267
      %270 = dma.vmem_to_hbm [thread:$0]  %s268, 32, %s7, [#allocation3]
    $region33: #{tpu_custom_call.1} parent=1 // pred_fallthru
      _
    // Predicated region
    $region34: #{tpu_custom_call.1} parent=1 // pred_check
      _
    $region35: #{tpu_custom_call.1} parent=1 // pred_check_branch
      %272 = sbr.rel (0) target = $region37
    $region36: #{tpu_custom_call.1} parent=1 // pred_region
      %273 = dma.done [#allocation3], 32
    $region37: #{tpu_custom_call.1} parent=1 // pred_fallthru
      _
    %274 = vsyncpa [#allocation3], 1

</llo_original>
